<compile_context>
chip_gen: v5e
topology: v5e:2x2
jax: 0.10.0
libtpu: 0.0.40
codegen_flags: <defaults>
</compile_context>

<pallas_src>
import functools

import jax
import jax.numpy as jnp
import numpy as np
from jax.experimental import pallas as pl
from jax.experimental.pallas import tpu as pltpu


def _multigat_kernel(nh_ref, eh_ref, S_ref, Dt_ref, M_ref, wext_ref, we_ref,
                     out_ref, *, lamda, num_layers, dout):
    l = pl.program_id(0)

    # Layer 0 seeds the resident output block with the input node features; the output
    # block then acts as the activation carry across the (sequential) layer axis.
    @pl.when(l == 0)
    def _():
        out_ref[...] = nh_ref[...]

    h = out_ref[...].astype(jnp.float32)                           # [N, Din]
    h_bf = h.astype(jnp.bfloat16)

    # z_ext = [ z | h@(wfc@a_src) | h@(wfc@a_dst) ]  -- attention vectors folded in.
    z_ext = jnp.dot(h_bf, wext_ref[0],
                    preferred_element_type=jnp.float32)            # [N, Dout+2]
    z_ext_bf = z_ext.astype(jnp.bfloat16)

    S = S_ref[...]                                                 # [E, N] bf16 one-hot(src)
    Dt = Dt_ref[...]                                               # [E, N] bf16 one-hot(dst)
    M = M_ref[...]                                                 # [N, E] bf16 = Dt^T

    # Gather per-edge src features AND src score in one MXU matmul.
    zs = jnp.dot(S, z_ext_bf, preferred_element_type=jnp.float32)  # [E, Dout+2]
    z_src = zs[:, :dout]                                           # [E, Dout]
    s_src = zs[:, dout:dout + 1]                                   # [E, 1]

    # Per-edge dst score (gather of the folded dst-score column only; z_dst not needed).
    sc_dst_bf = z_ext[:, dout + 1:dout + 2].astype(jnp.bfloat16)   # [N, 1]
    s_dst = jnp.dot(Dt, sc_dst_bf,
                    preferred_element_type=jnp.float32)            # [E, 1]

    # Folded edge contribution: (edge_fc(edge_h)) @ a_edge  (bias rides on the ones col).
    e_sc = jnp.dot(eh_ref[...], we_ref[0],
                   preferred_element_type=jnp.float32)             # [E, 1]

    a = s_src + s_dst + e_sc                                       # [E, 1]
    e = jnp.where(a > 0, a, jnp.float32(0.01) * a)                 # leaky_relu (slope 0.01)

    # Per-destination-node softmax over incoming edges, computed in edge space.
    e_row = jnp.transpose(e)                                       # [1, E]
    masked = jnp.where(M > 0, e_row, jnp.float32(-1e30))           # [N, E] (f32, max only)
    m = jnp.max(masked, axis=1, keepdims=True)                     # [N, 1] per-node max
    m_e = jnp.dot(Dt, m.astype(jnp.bfloat16),
                  preferred_element_type=jnp.float32)              # [E, 1] gathered max
    p = jnp.exp(e - m_e)                                           # [E, 1]  (only E exps)

    # Scatter-add numerator / denominator via the incidence matrix on the MXU.
    pz = (p * z_src).astype(jnp.bfloat16)                          # [E, Dout]
    numer = jnp.dot(M, pz, preferred_element_type=jnp.float32)     # [N, Dout]
    denom = jnp.dot(M, p.astype(jnp.bfloat16),
                    preferred_element_type=jnp.float32)            # [N, 1]
    inv = pl.reciprocal(jnp.where(denom > 0, denom, jnp.float32(1.0)), approx=True)
    h_msg = numer * inv                                            # zero-in-degree -> 0

    out = (1.0 - lamda) * h + lamda * h_msg

    @pl.when(l < num_layers - 1)                                   # inter-layer ReLU
    def _():
        out_ref[...] = jnp.maximum(out, 0.0).astype(out_ref.dtype)

    @pl.when(l >= num_layers - 1)                                  # last layer: no ReLU
    def _():
        out_ref[...] = out.astype(out_ref.dtype)


def multigat_forward(node_h, edge_h, src, dst, params_list, lamda):
    """MultiGAT.forward: L EdgeGAT layers fused into one pallas_call (grid over layers)."""
    E = int(src.shape[0])
    if E == 0:                     # EdgeGAT returns node_h unchanged when there are no edges
        return node_h
    N, Din = node_h.shape
    De = edge_h.shape[1]
    L = len(params_list)
    Dout = params_list[0]["wfc"].shape[1]
    assert Dout == Din, "residual mix / layer stacking requires node_out_dim == node_in_dim"

    # Graph structure as bf16 one-hot incidence (exact: entries are 0/1).
    S = jax.nn.one_hot(src, N, dtype=jnp.bfloat16)                 # [E, N]  src gather
    Dt = jax.nn.one_hot(dst, N, dtype=jnp.bfloat16)                # [E, N]  dst gather
    M = jnp.transpose(Dt)                                          # [N, E]  dst scatter

    # Edge features augmented with a ones column so the folded edge_fc bias rides along.
    eh_aug = jnp.concatenate(
        [edge_h, jnp.ones((E, 1), edge_h.dtype)], axis=1).astype(jnp.bfloat16)  # [E, De+1]

    # Host-side weight folding (per layer), stacked on a leading layer axis.
    wext_list, we_list = [], []
    for p in params_list:
        wext_list.append(jnp.concatenate(
            [p["wfc"], p["wfc"] @ p["asrc"], p["wfc"] @ p["adst"]], axis=1))     # [Din, Dout+2]
        we_list.append(jnp.concatenate(
            [p["wedge"] @ p["aedge"], p["bedge"] @ p["aedge"]], axis=0))         # [De+1, 1]
    wext_all = jnp.stack(wext_list).astype(jnp.bfloat16)           # [L, Din, Dout+2]
    we_all = jnp.stack(we_list).astype(jnp.bfloat16)               # [L, De+1, 1]

    kernel = functools.partial(_multigat_kernel, lamda=float(lamda),
                               num_layers=L, dout=int(Dout))

    return pl.pallas_call(
        kernel,
        grid=(L,),
        in_specs=[
            pl.BlockSpec((N, Din), lambda l: (0, 0)),               # node_h (layer-0 seed)
            pl.BlockSpec((E, De + 1), lambda l: (0, 0)),            # eh_aug (bf16, loaded once)
            pl.BlockSpec((E, N), lambda l: (0, 0)),                 # S  (loaded once)
            pl.BlockSpec((E, N), lambda l: (0, 0)),                 # Dt (loaded once)
            pl.BlockSpec((N, E), lambda l: (0, 0)),                 # M  (loaded once)
            pl.BlockSpec((1, Din, Dout + 2), lambda l: (l, 0, 0)),  # per-layer folded fc/attn
            pl.BlockSpec((1, De + 1, 1), lambda l: (l, 0, 0)),      # per-layer folded edge_fc
        ],
        out_specs=pl.BlockSpec((N, Dout), lambda l: (0, 0)),        # resident carry across layers
        out_shape=jax.ShapeDtypeStruct((N, Dout), node_h.dtype),
        compiler_params=pltpu.CompilerParams(
            dimension_semantics=("arbitrary",),   # layer axis is sequential (carried activation)
            vmem_limit_bytes=48 * 1024 * 1024,    # above 32 MiB scoped default, under v7x 64 MiB
        ),
    )(node_h, eh_aug, S, Dt, M, wext_all, we_all)


def init_edge_gat_params(key, node_in_dim, edge_in_dim, node_out_dim):
    """PyTorch-style uniform(-1/sqrt(fan_in), 1/sqrt(fan_in)) init; weights stored [in, out]."""
    k = jax.random.split(key, 5)

    def u(kk, shape, fan_in):
        b = 1.0 / np.sqrt(fan_in)
        return jax.random.uniform(kk, shape, jnp.float32, -b, b)

    attn_in = 2 * node_out_dim + edge_in_dim
    w_attn = u(k[3], (attn_in, 1), attn_in)                         # attn_fc weight (no bias)
    return {
        "wfc":   u(k[0], (node_in_dim, node_out_dim), node_in_dim),   # fc (bias=False)
        "wedge": u(k[1], (edge_in_dim, edge_in_dim), edge_in_dim),    # edge_fc weight
        "bedge": u(k[2], (1, edge_in_dim), edge_in_dim),              # edge_fc bias
        "asrc":  w_attn[:node_out_dim, :],
        "adst":  w_attn[node_out_dim:2 * node_out_dim, :],
        "aedge": w_attn[2 * node_out_dim:, :],
    }


def ref_multigat(node_h, edge_h, src, dst, params_list, lamda):
    """Pure numpy reference matching the DGL EdgeGAT semantics (f64)."""
    h = np.asarray(node_h, np.float64)
    eh = np.asarray(edge_h, np.float64)
    src = np.asarray(src); dst = np.asarray(dst)
    L = len(params_list)
    for li, p in enumerate(params_list):
        wfc = np.asarray(p["wfc"], np.float64)
        wedge = np.asarray(p["wedge"], np.float64)
        bedge = np.asarray(p["bedge"], np.float64)[0]
        asrc = np.asarray(p["asrc"], np.float64)[:, 0]
        adst = np.asarray(p["adst"], np.float64)[:, 0]
        aedge = np.asarray(p["aedge"], np.float64)[:, 0]
        z = h @ wfc
        ez = eh @ wedge + bedge
        a = z[src] @ asrc + z[dst] @ adst + ez @ aedge
        e = np.where(a > 0, a, 0.01 * a)
        out = np.zeros_like(z)
        for n in range(h.shape[0]):
            idx = np.where(dst == n)[0]
            if idx.size:
                s = e[idx] - e[idx].max()
                al = np.exp(s); al /= al.sum()
                out[n] = (al[:, None] * z[src[idx]]).sum(0)
        h = (1.0 - lamda) * h + lamda * out
        if li != L - 1:
            h = np.maximum(h, 0.0)
    return h.astype(np.float32)


if __name__ == "__main__":
    # Small shapes consistent with the module (node_out_dim == node_in_dim required).
    N = 8             # nodes
    E = 16            # edges
    node_in_dim = 32
    node_out_dim = 32
    edge_in_dim = 16
    layers = 2
    lamda = 0.5

    key = jax.random.PRNGKey(0)
    k_nh, k_eh, k_src, k_dst, k_params = jax.random.split(key, 5)

    node_h = jax.random.normal(k_nh, (N, node_in_dim), jnp.float32)
    edge_h = jax.random.normal(k_eh, (E, edge_in_dim), jnp.float32)
    src = jax.random.randint(k_src, (E,), 0, N, jnp.int32)
    dst = jax.random.randint(k_dst, (E,), 0, N, jnp.int32)

    params_list = [
        init_edge_gat_params(kk, node_in_dim, edge_in_dim, node_out_dim)
        for kk in jax.random.split(k_params, layers)
    ]

    out = multigat_forward(node_h, edge_h, src, dst, params_list, lamda)
    out = jax.block_until_ready(out)

    ref = ref_multigat(node_h, edge_h, src, dst, params_list, lamda)
    # bf16 MXU operands (vs f32-HIGHEST previously) -> loosened tolerance.
    np.testing.assert_allclose(np.asarray(out), ref, rtol=5e-2, atol=5e-2)

    print("KERNEL_OK")
</pallas_src>

<mosaic_0001>
module attributes {stable_mosaic.version = 11 : i64} {
  func.func @_multigat_kernel(%arg0: i32, %arg1: memref<8x32xf32, #tpu.memory_space<vmem>>, %arg2: memref<16x17xbf16, #tpu.memory_space<vmem>>, %arg3: memref<16x8xbf16, #tpu.memory_space<vmem>>, %arg4: memref<16x8xbf16, #tpu.memory_space<vmem>>, %arg5: memref<8x16xbf16, #tpu.memory_space<vmem>>, %arg6: memref<1x32x34xbf16, #tpu.memory_space<vmem>>, %arg7: memref<1x17x1xbf16, #tpu.memory_space<vmem>>, %arg8: memref<8x32xf32, #tpu.memory_space<vmem>>) attributes {dimension_semantics = [#tpu.dimension_semantics<arbitrary>], iteration_bounds = array<i64: 2>, scalar_prefetch = 0 : i64, scratch_operands = 0 : i64, tpu.core_type = #tpu.core_type<tc>, window_params = [{pipeline_mode = #tpu.pipeline_mode<synchronous>, transform_indices = @transform_0, window_bounds = array<i64: 8, 32>}, {pipeline_mode = #tpu.pipeline_mode<synchronous>, transform_indices = @transform_1, window_bounds = array<i64: 16, 17>}, {pipeline_mode = #tpu.pipeline_mode<synchronous>, transform_indices = @transform_2, window_bounds = array<i64: 16, 8>}, {pipeline_mode = #tpu.pipeline_mode<synchronous>, transform_indices = @transform_3, window_bounds = array<i64: 16, 8>}, {pipeline_mode = #tpu.pipeline_mode<synchronous>, transform_indices = @transform_4, window_bounds = array<i64: 8, 16>}, {transform_indices = @transform_5, window_bounds = array<i64: 1, 32, 34>}, {transform_indices = @transform_6, window_bounds = array<i64: 1, 17, 1>}, {pipeline_mode = #tpu.pipeline_mode<synchronous>, transform_indices = @transform_7, window_bounds = array<i64: 8, 32>}]} {
    %c0_i32 = arith.constant 0 : i32
    %0 = arith.cmpi eq, %arg0, %c0_i32 : i32
    %1 = arith.extui %0 : i1 to i32
    %c0_i32_0 = arith.constant 0 : i32
    %2 = arith.cmpi ne, %1, %c0_i32_0 : i32
    scf.if %2 {
      %c0_34 = arith.constant 0 : index
      %c0_35 = arith.constant 0 : index
      %66 = vector.load %arg1[%c0_34, %c0_35] : memref<8x32xf32, #tpu.memory_space<vmem>>, vector<8x32xf32>
      %c0_36 = arith.constant 0 : index
      %c0_37 = arith.constant 0 : index
      %67 = vector.load %arg8[%c0_36, %c0_37] : memref<8x32xf32, #tpu.memory_space<vmem>>, vector<8x32xf32>
      tpu.vector_store %arg8[%c0_36, %c0_37], %66 {strides = array<i32>} : memref<8x32xf32, #tpu.memory_space<vmem>>, vector<8x32xf32>,
    } else {
    }
    %c0 = arith.constant 0 : index
    %c0_1 = arith.constant 0 : index
    %3 = vector.load %arg8[%c0, %c0_1] : memref<8x32xf32, #tpu.memory_space<vmem>>, vector<8x32xf32>
    %4 = arith.truncf %3 : vector<8x32xf32> to vector<8x32xbf16>
    %c0_2 = arith.constant 0 : index
    %c0_3 = arith.constant 0 : index
    %c0_4 = arith.constant 0 : index
    %5 = vector.load %arg6[%c0_2, %c0_3, %c0_4] : memref<1x32x34xbf16, #tpu.memory_space<vmem>>, vector<1x32x34xbf16>
    %6 = vector.shape_cast %5 : vector<1x32x34xbf16> to vector<32x34xbf16>
    %cst = arith.constant dense<0.000000e+00> : vector<8x34xf32>
    %7 = tpu.matmul %4, %6, %cst {dimension_numbers = #tpu.dot_dimension_numbers<[1], [0], [0], [1], [0, 0, 1, 1], [], []>} : vector<8x32xbf16>, vector<32x34xbf16>, vector<8x34xf32> -> vector<8x34xf32>
    %8 = arith.truncf %7 : vector<8x34xf32> to vector<8x34xbf16>
    %c0_5 = arith.constant 0 : index
    %c0_6 = arith.constant 0 : index
    %9 = vector.load %arg3[%c0_5, %c0_6] : memref<16x8xbf16, #tpu.memory_space<vmem>>, vector<16x8xbf16>
    %c0_7 = arith.constant 0 : index
    %c0_8 = arith.constant 0 : index
    %10 = vector.load %arg4[%c0_7, %c0_8] : memref<16x8xbf16, #tpu.memory_space<vmem>>, vector<16x8xbf16>
    %c0_9 = arith.constant 0 : index
    %c0_10 = arith.constant 0 : index
    %11 = vector.load %arg5[%c0_9, %c0_10] : memref<8x16xbf16, #tpu.memory_space<vmem>>, vector<8x16xbf16>
    %cst_11 = arith.constant dense<0.000000e+00> : vector<16x34xf32>
    %12 = tpu.matmul %9, %8, %cst_11 {dimension_numbers = #tpu.dot_dimension_numbers<[1], [0], [0], [1], [0, 0, 1, 1], [], []>} : vector<16x8xbf16>, vector<8x34xbf16>, vector<16x34xf32> -> vector<16x34xf32>
    %13 = vector.extract_strided_slice %12 {offsets = [0, 0], sizes = [16, 32], strides = [1, 1]} : vector<16x34xf32> to vector<16x32xf32>
    %14 = vector.extract_strided_slice %12 {offsets = [0, 32], sizes = [16, 1], strides = [1, 1]} : vector<16x34xf32> to vector<16x1xf32>
    %15 = vector.extract_strided_slice %7 {offsets = [0, 33], sizes = [8, 1], strides = [1, 1]} : vector<8x34xf32> to vector<8x1xf32>
    %16 = arith.truncf %15 : vector<8x1xf32> to vector<8x1xbf16>
    %cst_12 = arith.constant dense<0.000000e+00> : vector<16x1xf32>
    %17 = tpu.matmul %10, %16, %cst_12 {dimension_numbers = #tpu.dot_dimension_numbers<[1], [0], [0], [1], [0, 0, 1, 1], [], []>} : vector<16x8xbf16>, vector<8x1xbf16>, vector<16x1xf32> -> vector<16x1xf32>
    %c0_13 = arith.constant 0 : index
    %c0_14 = arith.constant 0 : index
    %18 = vector.load %arg2[%c0_13, %c0_14] : memref<16x17xbf16, #tpu.memory_space<vmem>>, vector<16x17xbf16>
    %c0_15 = arith.constant 0 : index
    %c0_16 = arith.constant 0 : index
    %c0_17 = arith.constant 0 : index
    %19 = vector.load %arg7[%c0_15, %c0_16, %c0_17] : memref<1x17x1xbf16, #tpu.memory_space<vmem>>, vector<1x17x1xbf16>
    %20 = vector.shape_cast %19 : vector<1x17x1xbf16> to vector<17x1xbf16>
    %cst_18 = arith.constant dense<0.000000e+00> : vector<16x1xf32>
    %21 = tpu.matmul %18, %20, %cst_18 {dimension_numbers = #tpu.dot_dimension_numbers<[1], [0], [0], [1], [0, 0, 1, 1], [], []>} : vector<16x17xbf16>, vector<17x1xbf16>, vector<16x1xf32> -> vector<16x1xf32>
    %22 = arith.addf %14, %17 : vector<16x1xf32>
    %23 = arith.addf %22, %21 : vector<16x1xf32>
    %cst_19 = arith.constant 0.000000e+00 : f32
    %24 = vector.broadcast %cst_19 : f32 to vector<16x1xf32>
    %25 = arith.cmpf ogt, %23, %24 : vector<16x1xf32>
    %cst_20 = arith.constant 0.00999999977 : f32
    %26 = vector.broadcast %cst_20 : f32 to vector<16x1xf32>
    %27 = arith.mulf %26, %23 : vector<16x1xf32>
    %28 = arith.select %25, %23, %27 : vector<16x1xi1>, vector<16x1xf32>
    %29 = tpu.transpose %28, [1, 0] : vector<16x1xf32> -> vector<1x16xf32>
    %cst_21 = arith.constant 0.000000e+00 : bf16
    %30 = vector.broadcast %cst_21 : bf16 to vector<8x16xbf16>
    %31 = arith.cmpf ogt, %11, %30 : vector<8x16xbf16>
    %cst_22 = arith.constant -1.000000e+30 : f32
    %32 = vector.shape_cast %29 : vector<1x16xf32> to vector<1x16xf32>
    %33 = vector.broadcast %32 : vector<1x16xf32> to vector<8x16xf32>
    %34 = vector.broadcast %cst_22 : f32 to vector<8x16xf32>
    %35 = arith.select %31, %33, %34 : vector<8x16xi1>, vector<8x16xf32>
    %cst_23 = arith.constant dense<0xFF800000> : vector<8xf32>
    %36 = vector.multi_reduction <maximumf>, %35, %cst_23 [1] : vector<8x16xf32> to vector<8xf32>
    %37 = vector.shape_cast %36 : vector<8xf32> to vector<8x1xf32>
    %38 = arith.truncf %37 : vector<8x1xf32> to vector<8x1xbf16>
    %cst_24 = arith.constant dense<0.000000e+00> : vector<16x1xf32>
    %39 = tpu.matmul %10, %38, %cst_24 {dimension_numbers = #tpu.dot_dimension_numbers<[1], [0], [0], [1], [0, 0, 1, 1], [], []>} : vector<16x8xbf16>, vector<8x1xbf16>, vector<16x1xf32> -> vector<16x1xf32>
    %40 = arith.subf %28, %39 : vector<16x1xf32>
    %41 = math.exp %40 : vector<16x1xf32>
    %42 = vector.broadcast %41 : vector<16x1xf32> to vector<16x32xf32>
    %43 = arith.mulf %42, %13 : vector<16x32xf32>
    %44 = arith.truncf %43 : vector<16x32xf32> to vector<16x32xbf16>
    %cst_25 = arith.constant dense<0.000000e+00> : vector<8x32xf32>
    %45 = tpu.matmul %11, %44, %cst_25 {dimension_numbers = #tpu.dot_dimension_numbers<[1], [0], [0], [1], [0, 0, 1, 1], [], []>} : vector<8x16xbf16>, vector<16x32xbf16>, vector<8x32xf32> -> vector<8x32xf32>
    %46 = arith.truncf %41 : vector<16x1xf32> to vector<16x1xbf16>
    %cst_26 = arith.constant dense<0.000000e+00> : vector<8x1xf32>
    %47 = tpu.matmul %11, %46, %cst_26 {dimension_numbers = #tpu.dot_dimension_numbers<[1], [0], [0], [1], [0, 0, 1, 1], [], []>} : vector<8x16xbf16>, vector<16x1xbf16>, vector<8x1xf32> -> vector<8x1xf32>
    %cst_27 = arith.constant 0.000000e+00 : f32
    %48 = vector.broadcast %cst_27 : f32 to vector<8x1xf32>
    %49 = arith.cmpf ogt, %47, %48 : vector<8x1xf32>
    %cst_28 = arith.constant 1.000000e+00 : f32
    %50 = vector.broadcast %cst_28 : f32 to vector<8x1xf32>
    %51 = arith.select %49, %47, %50 : vector<8x1xi1>, vector<8x1xf32>
    %52 = tpu.reciprocal %51 {approx = true} : vector<8x1xf32> -> vector<8x1xf32>
    %53 = vector.broadcast %52 : vector<8x1xf32> to vector<8x32xf32>
    %54 = arith.mulf %45, %53 : vector<8x32xf32>
    %cst_29 = arith.constant 5.000000e-01 : f32
    %55 = vector.broadcast %cst_29 : f32 to vector<8x32xf32>
    %56 = arith.mulf %55, %3 : vector<8x32xf32>
    %cst_30 = arith.constant 5.000000e-01 : f32
    %57 = vector.broadcast %cst_30 : f32 to vector<8x32xf32>
    %58 = arith.mulf %57, %54 : vector<8x32xf32>
    %59 = arith.addf %56, %58 : vector<8x32xf32>
    %c1_i32 = arith.constant 1 : i32
    %60 = arith.cmpi slt, %arg0, %c1_i32 : i32
    %61 = arith.extui %60 : i1 to i32
    %c0_i32_31 = arith.constant 0 : i32
    %62 = arith.cmpi ne, %61, %c0_i32_31 : i32
    scf.if %62 {
      %cst_34 = arith.constant 0.000000e+00 : f32
      %66 = vector.broadcast %cst_34 : f32 to vector<8x32xf32>
      %67 = arith.maximumf %59, %66 : vector<8x32xf32>
      %c0_35 = arith.constant 0 : index
      %c0_36 = arith.constant 0 : index
      %68 = vector.load %arg8[%c0_35, %c0_36] : memref<8x32xf32, #tpu.memory_space<vmem>>, vector<8x32xf32>
      tpu.vector_store %arg8[%c0_35, %c0_36], %67 {strides = array<i32>} : memref<8x32xf32, #tpu.memory_space<vmem>>, vector<8x32xf32>,
    } else {
    }
    %c1_i32_32 = arith.constant 1 : i32
    %63 = arith.cmpi sge, %arg0, %c1_i32_32 : i32
    %64 = arith.extui %63 : i1 to i32
    %c0_i32_33 = arith.constant 0 : i32
    %65 = arith.cmpi ne, %64, %c0_i32_33 : i32
    scf.if %65 {
      %c0_34 = arith.constant 0 : index
      %c0_35 = arith.constant 0 : index
      %66 = vector.load %arg8[%c0_34, %c0_35] : memref<8x32xf32, #tpu.memory_space<vmem>>, vector<8x32xf32>
      tpu.vector_store %arg8[%c0_34, %c0_35], %59 {strides = array<i32>} : memref<8x32xf32, #tpu.memory_space<vmem>>, vector<8x32xf32>,
    } else {
    }
    return
  }
  func.func @transform_0(%arg0: i32) -> (i32, i32) {
    %c0_i32 = arith.constant 0 : i32
    %c0_i32_0 = arith.constant 0 : i32
    %c0_i32_1 = arith.constant 0 : i32
    return %c0_i32, %c0_i32_0 : i32, i32
  }
  func.func @transform_1(%arg0: i32) -> (i32, i32) {
    %c0_i32 = arith.constant 0 : i32
    %c0_i32_0 = arith.constant 0 : i32
    %c0_i32_1 = arith.constant 0 : i32
    return %c0_i32, %c0_i32_0 : i32, i32
  }
  func.func @transform_2(%arg0: i32) -> (i32, i32) {
    %c0_i32 = arith.constant 0 : i32
    %c0_i32_0 = arith.constant 0 : i32
    %c0_i32_1 = arith.constant 0 : i32
    return %c0_i32, %c0_i32_0 : i32, i32
  }
  func.func @transform_3(%arg0: i32) -> (i32, i32) {
    %c0_i32 = arith.constant 0 : i32
    %c0_i32_0 = arith.constant 0 : i32
    %c0_i32_1 = arith.constant 0 : i32
    return %c0_i32, %c0_i32_0 : i32, i32
  }
  func.func @transform_4(%arg0: i32) -> (i32, i32) {
    %c0_i32 = arith.constant 0 : i32
    %c0_i32_0 = arith.constant 0 : i32
    %c0_i32_1 = arith.constant 0 : i32
    return %c0_i32, %c0_i32_0 : i32, i32
  }
  func.func @transform_5(%arg0: i32) -> (i32, i32, i32) {
    %c0_i32 = arith.constant 0 : i32
    %c0_i32_0 = arith.constant 0 : i32
    %c0_i32_1 = arith.constant 0 : i32
    return %arg0, %c0_i32, %c0_i32_0 : i32, i32, i32
  }
  func.func @transform_6(%arg0: i32) -> (i32, i32, i32) {
    %c0_i32 = arith.constant 0 : i32
    %c0_i32_0 = arith.constant 0 : i32
    %c0_i32_1 = arith.constant 0 : i32
    return %arg0, %c0_i32, %c0_i32_0 : i32, i32, i32
  }
  func.func @transform_7(%arg0: i32) -> (i32, i32) {
    %c0_i32 = arith.constant 0 : i32
    %c0_i32_0 = arith.constant 0 : i32
    %c0_i32_1 = arith.constant 0 : i32
    return %c0_i32, %c0_i32_0 : i32, i32
  }
}

</mosaic_0001>

<llo_original>
// kernel: tpu_custom_call.1
$region0: #{tpu_custom_call.1}
  #allocation0 [shape = 'u32[]', space=smem, size = 0x4, offset = 0x4, fixed_abs, tag = 'smem constant byte address 0x4 - core index']
  #allocation1 [shape = 'u32[72,128]{1,0:T(1,128)}', space=vmem, size = 0x9000, scoped, tag = 'internal scratch']
  %s0 = inlined_call_operand.vmem [shape: f32[8,32], index: 0, kind: input, shape index: {}]
  %s1 = inlined_call_operand.hbm [shape: bf16[16,17], index: 1, kind: input, shape index: {}]
  %s2 = inlined_call_operand.vmem [shape: bf16[16,8], index: 2, kind: input, shape index: {}]
  %s3 = inlined_call_operand.vmem [shape: bf16[16,8], index: 3, kind: input, shape index: {}]
  %s4 = inlined_call_operand.vmem [shape: bf16[8,16], index: 4, kind: input, shape index: {}]
  %s5 = inlined_call_operand.vmem [shape: bf16[2,32,34], index: 5, kind: input, shape index: {}]
  %s6 = inlined_call_operand.vmem [shape: bf16[2,17,1], index: 6, kind: input, shape index: {}]
  %s7 = inlined_call_operand.hbm [shape: f32[8,32], index: 7, kind: output, shape index: {}]
  %s8 = sld [smem:[#allocation0]]
  $region77: #{tpu_custom_call.1} parent=0
    _
  %s10 = ssub.s32 1, %s8
  %s11 = scalar_select 0, %s10, %s8
  $region1: #{tpu_custom_call.1} parent=0
    #allocation2 [shape = 'u8[4096]{0}', space=vmem, size = 0x1000, scoped, tag = 'input window, operand 1, single buffered']
    #allocation3 [shape = 's32[2]{0}', space=sflag, size = 0x8, scoped, tag = 'scoped memory for tpu_custom_call.1']
    #allocation4 [shape = 's32[2]{0}', space=sflag, size = 0x8, scoped, tag = 'scoped memory for tpu_custom_call.1']
    #allocation5 [shape = 'u8[4096]{0}', space=vmem, size = 0x1000, scoped, tag = 'output window, operand 0, single buffered']
    %12 = vsyncpa [#allocation3], 0
    %13 = vsyncpa [#allocation4], 0
    loop: start=0, step=1, limit=4
    $region2: #{tpu_custom_call.1} parent=1 // loop_pre_header
      _
    $region3: #{tpu_custom_call.1} parent=1 // loop_header
      %s15 = sphi 0, %s19
      %p16 = scmp.ge.s32.totalorder %s15, 4
      %s23 = sphi 0, %s23
      %s25 = sphi 0, %s23
      %s26 = sphi 0, %s25
      %s40 = sphi 0, %s26
      %s44 = sphi 0, %s44
      %s46 = sphi 0, %s44
      %s47 = sphi 0, %s46
      %s61 = sphi 0, %s47
      %s65 = sphi 0, %s65
      %s67 = sphi 0, %s65
      %s68 = sphi 0, %s67
      %s82 = sphi 0, %s68
      %s86 = sphi 0, %s86
      %s88 = sphi 0, %s86
      %s89 = sphi 0, %s88
      %s103 = sphi 0, %s89
      %s107 = sphi 0, %s107
      %s109 = sphi 0, %s107
      %s110 = sphi 0, %s109
      %s124 = sphi 0, %s110
      %s130 = sphi 0, %s132
      %s133 = sphi 0, %s130
      %s134 = sphi 0, %s133
      %s150 = sphi 0, %s134
      %s156 = sphi 0, %s158
      %s159 = sphi 0, %s156
      %s160 = sphi 0, %s159
      %s176 = sphi 0, %s160
      %s180 = sphi 0, %s180
      %s182 = sphi 0, %s180
      %s183 = sphi 0, %s182
      %s197 = sphi 0, %s183
    $region4: #{tpu_custom_call.1} parent=1 // loop_header_branch
      %18 = sbr.rel (%p16) target = $region8
    $region5: #{tpu_custom_call.1} parent=1 // loop_body
      %s20 = ssub.s32 %s15, 1
      %s21 = ssub.s32 %s15, 2
      %s22 = sadd.s32 %s15, 1
      %s24 = sadd.s32 %s23, 1
      %p27 = scmp.eq.s32.totalorder %s15, 1
      %p28 = scmp.ne.s32.totalorder %s23, %s25
      %p29 = scmp.eq.s32.totalorder %s15, 0
      %p30 = por %p28, %p29
      %p31 = scmp.ne.s32.totalorder %s23, %s25
      %p32 = scmp.eq.s32.totalorder %s20, 1
      %p33 = por %p31, %p32
      %p34 = scmp.ne.s32.totalorder %s25, %s26
      %p35 = scmp.eq.s32.totalorder %s20, 0
      %p36 = por %p34, %p35
      %p37 = scmp.ne.s32.totalorder %s25, %s26
      %p38 = scmp.eq.s32.totalorder %s21, 1
      %p39 = por %p37, %p38
      %p41 = scmp.ne.s32.totalorder %s26, %s40
      %p42 = scmp.eq.s32.totalorder %s21, 0
      %p43 = por %p41, %p42
      %s45 = sadd.s32 %s44, 1
      %p48 = scmp.eq.s32.totalorder %s15, 1
      %p49 = scmp.ne.s32.totalorder %s44, %s46
      %p50 = scmp.eq.s32.totalorder %s15, 0
      %p51 = por %p49, %p50
      %p52 = scmp.ne.s32.totalorder %s44, %s46
      %p53 = scmp.eq.s32.totalorder %s20, 1
      %p54 = por %p52, %p53
      %p55 = scmp.ne.s32.totalorder %s46, %s47
      %p56 = scmp.eq.s32.totalorder %s20, 0
      %p57 = por %p55, %p56
      %p58 = scmp.ne.s32.totalorder %s46, %s47
      %p59 = scmp.eq.s32.totalorder %s21, 1
      %p60 = por %p58, %p59
      %p62 = scmp.ne.s32.totalorder %s47, %s61
      %p63 = scmp.eq.s32.totalorder %s21, 0
      %p64 = por %p62, %p63
      %s66 = sadd.s32 %s65, 1
      %p69 = scmp.eq.s32.totalorder %s15, 1
      %p70 = scmp.ne.s32.totalorder %s65, %s67
      %p71 = scmp.eq.s32.totalorder %s15, 0
      %p72 = por %p70, %p71
      %p73 = scmp.ne.s32.totalorder %s65, %s67
      %p74 = scmp.eq.s32.totalorder %s20, 1
      %p75 = por %p73, %p74
      %p76 = scmp.ne.s32.totalorder %s67, %s68
      %p77 = scmp.eq.s32.totalorder %s20, 0
      %p78 = por %p76, %p77
      %p79 = scmp.ne.s32.totalorder %s67, %s68
      %p80 = scmp.eq.s32.totalorder %s21, 1
      %p81 = por %p79, %p80
      %p83 = scmp.ne.s32.totalorder %s68, %s82
      %p84 = scmp.eq.s32.totalorder %s21, 0
      %p85 = por %p83, %p84
      %s87 = sadd.s32 %s86, 1
      %p90 = scmp.eq.s32.totalorder %s15, 1
      %p91 = scmp.ne.s32.totalorder %s86, %s88
      %p92 = scmp.eq.s32.totalorder %s15, 0
      %p93 = por %p91, %p92
      %p94 = scmp.ne.s32.totalorder %s86, %s88
      %p95 = scmp.eq.s32.totalorder %s20, 1
      %p96 = por %p94, %p95
      %p97 = scmp.ne.s32.totalorder %s88, %s89
      %p98 = scmp.eq.s32.totalorder %s20, 0
      %p99 = por %p97, %p98
      %p100 = scmp.ne.s32.totalorder %s88, %s89
      %p101 = scmp.eq.s32.totalorder %s21, 1
      %p102 = por %p100, %p101
      %p104 = scmp.ne.s32.totalorder %s89, %s103
      %p105 = scmp.eq.s32.totalorder %s21, 0
      %p106 = por %p104, %p105
      %s108 = sadd.s32 %s107, 1
      %p111 = scmp.eq.s32.totalorder %s15, 1
      %p112 = scmp.ne.s32.totalorder %s107, %s109
      %p113 = scmp.eq.s32.totalorder %s15, 0
      %p114 = por %p112, %p113
      %p115 = scmp.ne.s32.totalorder %s107, %s109
      %p116 = scmp.eq.s32.totalorder %s20, 1
      %p117 = por %p115, %p116
      %p118 = scmp.ne.s32.totalorder %s109, %s110
      %p119 = scmp.eq.s32.totalorder %s20, 0
      %p120 = por %p118, %p119
      %p121 = scmp.ne.s32.totalorder %s109, %s110
      %p122 = scmp.eq.s32.totalorder %s21, 1
      %p123 = por %p121, %p122
      %p125 = scmp.ne.s32.totalorder %s110, %s124
      %p126 = scmp.eq.s32.totalorder %s21, 0
      %p127 = por %p125, %p126
      %s128 = ssub.s32 %s15, %s22
      %p129 = scmp.eq.s32.totalorder %s128, 0
      %s131 = sadd.s32 %s130, 1
      %s132 = scalar_select %p129, %s130, %s131
      %p135 = pneg %p129
      %p136 = scmp.eq.s32.totalorder %s15, 1
      %p137 = por %p135, %p136
      %p138 = scmp.ne.s32.totalorder %s130, %s133
      %p139 = scmp.eq.s32.totalorder %s15, 0
      %p140 = por %p138, %p139
      %p141 = scmp.ne.s32.totalorder %s130, %s133
      %p142 = scmp.eq.s32.totalorder %s20, 1
      %p143 = por %p141, %p142
      %p144 = scmp.ne.s32.totalorder %s133, %s134
      %p145 = scmp.eq.s32.totalorder %s20, 0
      %p146 = por %p144, %p145
      %p147 = scmp.ne.s32.totalorder %s133, %s134
      %p148 = scmp.eq.s32.totalorder %s21, 1
      %p149 = por %p147, %p148
      %p151 = scmp.ne.s32.totalorder %s134, %s150
      %p152 = scmp.eq.s32.totalorder %s21, 0
      %p153 = por %p151, %p152
      %s154 = ssub.s32 %s15, %s22
      %p155 = scmp.eq.s32.totalorder %s154, 0
      %s157 = sadd.s32 %s156, 1
      %s158 = scalar_select %p155, %s156, %s157
      %p161 = pneg %p155
      %p162 = scmp.eq.s32.totalorder %s15, 1
      %p163 = por %p161, %p162
      %p164 = scmp.ne.s32.totalorder %s156, %s159
      %p165 = scmp.eq.s32.totalorder %s15, 0
      %p166 = por %p164, %p165
      %p167 = scmp.ne.s32.totalorder %s156, %s159
      %p168 = scmp.eq.s32.totalorder %s20, 1
      %p169 = por %p167, %p168
      %p170 = scmp.ne.s32.totalorder %s159, %s160
      %p171 = scmp.eq.s32.totalorder %s20, 0
      %p172 = por %p170, %p171
      %p173 = scmp.ne.s32.totalorder %s159, %s160
      %p174 = scmp.eq.s32.totalorder %s21, 1
      %p175 = por %p173, %p174
      %p177 = scmp.ne.s32.totalorder %s160, %s176
      %p178 = scmp.eq.s32.totalorder %s21, 0
      %p179 = por %p177, %p178
      %s181 = sadd.s32 %s180, 1
      %p184 = scmp.eq.s32.totalorder %s15, 1
      %p185 = scmp.ne.s32.totalorder %s180, %s182
      %p186 = scmp.eq.s32.totalorder %s15, 0
      %p187 = por %p185, %p186
      %p188 = scmp.ne.s32.totalorder %s180, %s182
      %p189 = scmp.eq.s32.totalorder %s20, 1
      %p190 = por %p188, %p189
      %p191 = scmp.ne.s32.totalorder %s182, %s183
      %p192 = scmp.eq.s32.totalorder %s20, 0
      %p193 = por %p191, %p192
      %p194 = scmp.ne.s32.totalorder %s182, %s183
      %p195 = scmp.eq.s32.totalorder %s21, 1
      %p196 = por %p194, %p195
      %p198 = scmp.ne.s32.totalorder %s183, %s197
      %p199 = scmp.eq.s32.totalorder %s21, 0
      %p200 = por %p198, %p199
      %p201 = scmp.le.s32.totalorder 1, %s15
      %p202 = scmp.lt.s32.totalorder %s15, 3
      %p203 = pnand %p201, %p202
      %p204 = pneg %p203
      // Predicated region
      $region9: #{tpu_custom_call.1} parent=5 // pred_check
        _
      $region10: #{tpu_custom_call.1} parent=5 // pred_check_branch
        %206 = sbr.rel (%p203) target = $region12
      $region11: #{tpu_custom_call.1} parent=5 // pred_region
        %s207 = ssub.s32 %s15, 1
        // Predicated region
        $region13: #{tpu_custom_call.1} parent=11 // pred_check
          %p208 = pneg %p36
        $region14: #{tpu_custom_call.1} parent=11 // pred_check_branch
          %210 = sbr.rel (%p208) target = $region16
        $region15: #{tpu_custom_call.1} parent=11 // pred_region
          _
        $region16: #{tpu_custom_call.1} parent=11 // pred_fallthru
          _
        // Predicated region
        $region17: #{tpu_custom_call.1} parent=11 // pred_check
          %p211 = pneg %p57
        $region18: #{tpu_custom_call.1} parent=11 // pred_check_branch
          %213 = sbr.rel (%p211) target = $region20
        $region19: #{tpu_custom_call.1} parent=11 // pred_region
          %215 = vsyncadd [#allocation3], 0
          %s216 = sshll.u32 %s1, 4
          %s217 = int_to_ptr.hbm [resolvable:$true] %s216
          %s218 = sshll.u32 [#allocation2], 4
          %s219 = int_to_ptr.vmem [resolvable:$true] %s218
          %224 = dma.hbm_to_vmem [thread:$0]  %s217, 128, %s219, [#allocation3], 64, 64, 4
        $region20: #{tpu_custom_call.1} parent=11 // pred_fallthru
          _
        // Predicated region
        $region21: #{tpu_custom_call.1} parent=11 // pred_check
          %p225 = pneg %p78
        $region22: #{tpu_custom_call.1} parent=11 // pred_check_branch
          %227 = sbr.rel (%p225) target = $region24
        $region23: #{tpu_custom_call.1} parent=11 // pred_region
          _
        $region24: #{tpu_custom_call.1} parent=11 // pred_fallthru
          _
        // Predicated region
        $region25: #{tpu_custom_call.1} parent=11 // pred_check
          %p228 = pneg %p99
        $region26: #{tpu_custom_call.1} parent=11 // pred_check_branch
          %230 = sbr.rel (%p228) target = $region28
        $region27: #{tpu_custom_call.1} parent=11 // pred_region
          _
        $region28: #{tpu_custom_call.1} parent=11 // pred_fallthru
          _
        // Predicated region
        $region29: #{tpu_custom_call.1} parent=11 // pred_check
          %p231 = pneg %p120
        $region30: #{tpu_custom_call.1} parent=11 // pred_check_branch
          %233 = sbr.rel (%p231) target = $region32
        $region31: #{tpu_custom_call.1} parent=11 // pred_region
          _
        $region32: #{tpu_custom_call.1} parent=11 // pred_fallthru
          _
      $region12: #{tpu_custom_call.1} parent=5 // pred_fallthru
        _
      %p234 = scmp.lt.s32.totalorder %s15, 2
      // Predicated region
      $region33: #{tpu_custom_call.1} parent=5 // pred_check
        %p235 = pneg %p234
      $region34: #{tpu_custom_call.1} parent=5 // pred_check_branch
        %237 = sbr.rel (%p235) target = $region36
      $region35: #{tpu_custom_call.1} parent=5 // pred_region
        // Predicated region
        $region37: #{tpu_custom_call.1} parent=35 // pred_check
          %p238 = pneg %p140
        $region38: #{tpu_custom_call.1} parent=35 // pred_check_branch
          %240 = sbr.rel (%p238) target = $region40
        $region39: #{tpu_custom_call.1} parent=35 // pred_region
          %p241 = scmp.lt.s32.totalorder %s15, 1
          %s242 = scalar_select %p241, %s15, 1
          %s243 = smul.addr %s242, 4
          %s244 = smul.addr %s243, 4
          %s245 = scalar_lea.vmem %s5, %s244
        $region40: #{tpu_custom_call.1} parent=35 // pred_fallthru
          _
        // Predicated region
        $region41: #{tpu_custom_call.1} parent=35 // pred_check
          %p246 = pneg %p166
        $region42: #{tpu_custom_call.1} parent=35 // pred_check_branch
          %248 = sbr.rel (%p246) target = $region44
        $region43: #{tpu_custom_call.1} parent=35 // pred_region
          %p249 = scmp.lt.s32.totalorder %s15, 1
          %s250 = scalar_select %p249, %s15, 1
          %s251 = smul.addr %s250, 3
          %s252 = smul.addr %s251, 4
          %s253 = scalar_lea.vmem %s6, %s252
        $region44: #{tpu_custom_call.1} parent=35 // pred_fallthru
          _
      $region36: #{tpu_custom_call.1} parent=5 // pred_fallthru
        _
      %p254 = scmp.le.s32.totalorder 1, %s15
      %p255 = scmp.lt.s32.totalorder %s15, 3
      %p256 = pnand %p254, %p255
      %p257 = pneg %p256
      // Predicated region
      $region45: #{tpu_custom_call.1} parent=5 // pred_check
        _
      $region46: #{tpu_custom_call.1} parent=5 // pred_check_branch
        %259 = sbr.rel (%p256) target = $region48
      $region47: #{tpu_custom_call.1} parent=5 // pred_region
        %s260 = ssub.s32 %s15, 1
        // Predicated region
        $region49: #{tpu_custom_call.1} parent=47 // pred_check
          %p261 = pneg %p57
        $region50: #{tpu_custom_call.1} parent=47 // pred_check_branch
          %263 = sbr.rel (%p261) target = $region52
        $region51: #{tpu_custom_call.1} parent=47 // pred_region
          %265 = dma.done [#allocation3], 128
        $region52: #{tpu_custom_call.1} parent=47 // pred_fallthru
          _
        %p266 = pneg %p36
        %p267 = pneg %p33
        %p268 = pneg %p57
        %p269 = pneg %p54
        %p270 = pneg %p78
        %p271 = pneg %p75
        %p272 = pneg %p99
        %p273 = pneg %p96
        %p274 = pneg %p120
        %p275 = pneg %p117
        %p276 = scmp.lt.s32.totalorder %s20, 1
        %s277 = scalar_select %p276, %s20, 1
        %s278 = smul.addr %s277, 4
        %s279 = smul.addr %s278, 4
        %s280 = scalar_lea.vmem %s5, %s279
        %p281 = pneg %p146
        %p282 = pneg %p143
        %p283 = scmp.lt.s32.totalorder %s20, 1
        %s284 = scalar_select %p283, %s20, 1
        %s285 = smul.addr %s284, 3
        %s286 = smul.addr %s285, 4
        %s287 = scalar_lea.vmem %s6, %s286
        %p288 = pneg %p172
        %p289 = pneg %p169
        %p290 = pneg %p193
        %p291 = pneg %p190
        %p292 = scmp.lt.s32.totalorder %s20, 1
        %s293 = scalar_select %p292, %s20, 1
        %s294 = smul.addr %s293, 4
        %s295 = smul.addr %s294, 4
        %s296 = scalar_lea.vmem %s5, %s295
        %p297 = scmp.lt.s32.totalorder %s20, 1
        %s298 = scalar_select %p297, %s20, 1
        %s299 = smul.addr %s298, 3
        %s300 = smul.addr %s299, 4
        %s301 = scalar_lea.vmem %s6, %s300
        %p303 = scmp.eq.s32.totalorder %s20, 0
        // Predicated region
        $region53: #{tpu_custom_call.1} parent=47 // pred_check
          %p304 = pneg %p303
        $region54: #{tpu_custom_call.1} parent=47 // pred_check_branch
          %306 = sbr.rel (%p304) target = $region56
        $region55: #{tpu_custom_call.1} parent=47 // pred_region
          %v307 = vld [vmem:[%s0] sm:$0xff]
          %vm308 = vcmask 261120
          %309 = vst.msk [vmem:[#allocation5] sm:$0xff] %vm308, %v307
        $region56: #{tpu_custom_call.1} parent=47 // pred_fallthru
          _
        %v310 = vld [vmem:[#allocation5] sm:$0xff]
        %v311 = vpack.c.bf16 %v310, %v310
        %v312 = vld [vmem:[%s296] sm:$0xf]
        %v313 = vld [vmem:[%s296 + $0x4] sm:$0xf]
        %v314 = vld [vmem:[%s296 + $0x8] sm:$0xf]
        %v315 = vld [vmem:[%s296 + $0xc] sm:$0xf]
        %v320 = vunpack.c.l.b16 %v312
        %v321 = vunpack.c.l.b16 %v313
        %v322 = vunpack.c.l.b16 %v314
        %v323 = vunpack.c.l.b16 %v315
        %v324 = vpack.c.b16 %v321, %v320
        %v325 = vpack.c.b16 %v323, %v322
        %vm328 = vcmask 261120
        %v330 = vsel %vm328, %v311, 0
        %332 = vmatpush.bf16.msra.mxu0 0
        %333 = vmatpush.bf16.msra.mxu0 0
        %334 = vmatpush.bf16.msra.mxu0 0
        %335 = vmatpush.bf16.msra.mxu0 0
        %336 = vmatpush.bf16.msra.mxu0 0
        %337 = vmatpush.bf16.msra.mxu0 0
        %338 = vmatpush.bf16.msra.mxu0 %v325
        %339 = vmatpush.bf16.msra.mxu0 %v324
        %340 = vmatmul.bf16.gmra.mxu0 %v330
        %v341 = vpop.f32.mrf.mxu0
        %v342 = vadd.f32 0.0, %v341
        %v343 = vpop.f32.mrf.mxu0
        %344 = vdwg.mxu0
        %v345 = vpack.c.bf16 %v342, %v342
        %v346 = vld [vmem:[%s2] sm:$0xf]
        %v347 = vld [vmem:[%s2 + $0x4] sm:$0xf]
        %v348 = vld [vmem:[%s3] sm:$0xf]
        %v349 = vld [vmem:[%s3 + $0x4] sm:$0xf]
        %v350 = vld [vmem:[%s4] sm:$0xf]
        %v353 = vunpack.c.l.b16 %v346
        %v354 = vunpack.c.l.b16 %v347
        %v355 = vpack.c.b16 %v354, %v353
        %vm356 = vcmask 64512
        %v358 = vsel %vm356, %v355, 0
        %vm360 = vcmask 1043456
        %v362 = vsel %vm360, %v345, 0
        %364 = vmatpush.bf16.msra.mxu0 0
        %365 = vmatpush.bf16.msra.mxu0 0
        %366 = vmatpush.bf16.msra.mxu0 0
        %367 = vmatpush.bf16.msra.mxu0 0
        %368 = vmatpush.bf16.msra.mxu0 0
        %369 = vmatpush.bf16.msra.mxu0 0
        %370 = vmatpush.bf16.msra.mxu0 0
        %371 = vmatpush.bf16.msra.mxu0 %v362
        %372 = vmatmul.bf16.gmra.mxu0 %v358
        %v373 = vpop.f32.mrf.mxu0
        %v374 = vadd.f32 0.0, %v373
        %v375 = vpop.f32.mrf.mxu0
        %v376 = vadd.f32 0.0, %v375
        %377 = vdwg.mxu0
        %v380 = vunpack.c.l.b16 %v348
        %v381 = vunpack.c.l.b16 %v349
        %v382 = vpack.c.b16 %v381, %v380
        %384 = vrot.lane.b32.xlu0 %v345, 95
        %v385 = vpop.permute.xlu0 %384
        %v387 = vsel %vm356, %v382, 0
        %v390 = vsel %vm360, %v385, 0
        %392 = vmatpush.bf16.msra.mxu0 0
        %393 = vmatpush.bf16.msra.mxu0 0
        %394 = vmatpush.bf16.msra.mxu0 0
        %395 = vmatpush.bf16.msra.mxu0 0
        %396 = vmatpush.bf16.msra.mxu0 0
        %397 = vmatpush.bf16.msra.mxu0 0
        %398 = vmatpush.bf16.msra.mxu0 0
        %399 = vmatpush.bf16.msra.mxu0 %v390
        %400 = vmatmul.bf16.gmra.mxu0 %v387
        %v401 = vpop.f32.mrf.mxu0
        %v402 = vadd.f32 0.0, %v401
        %v403 = vpop.f32.mrf.mxu0
        %v404 = vadd.f32 0.0, %v403
        %405 = vdwg.mxu0
        %v406 = vld [vmem:[#allocation2] sm:$0xf]
        %v407 = vld [vmem:[#allocation2 + $0x4] sm:$0xf]
        %v408 = vld [vmem:[%s301] sm:$0xf]
        %v409 = vld [vmem:[%s301 + $0x4] sm:$0xf]
        %v410 = vld [vmem:[%s301 + $0x8] sm:$0x1]
        %v413 = vunpack.c.l.b16 %v406
        %v414 = vunpack.c.l.b16 %v407
        %v415 = vpack.c.b16 %v414, %v413
        %v419 = vunpack.c.l.b16 %v408
        %v420 = vunpack.c.l.b16 %v409
        %v421 = vunpack.c.l.b16 %v410
        %v422 = vpack.c.b16 %v420, %v419
        %v423 = vpack.c.b16 %v421, %v421
        %vm425 = vcmask 138240
        %v427 = vsel %vm425, %v415, 0
        %vm429 = vcmask 1040384
        %v430 = vsel 0, 4294967295, 65535
        %v431 = vsel %vm429, %v430, 0
        %v433 = vand.u32 %v423, %v431
        %435 = vmatpush.bf16.msra.mxu0 0
        %436 = vmatpush.bf16.msra.mxu0 0
        %437 = vmatpush.bf16.msra.mxu0 0
        %438 = vmatpush.bf16.msra.mxu0 0
        %439 = vmatpush.bf16.msra.mxu0 0
        %440 = vmatpush.bf16.msra.mxu0 0
        %441 = vmatpush.bf16.msra.mxu0 %v433
        %442 = vmatpush.bf16.msra.mxu0 %v422
        %443 = vmatmul.bf16.gmra.mxu0 %v427
        %v444 = vpop.f32.mrf.mxu0
        %v445 = vadd.f32 0.0, %v444
        %v446 = vpop.f32.mrf.mxu0
        %v447 = vadd.f32 0.0, %v446
        %448 = vdwg.mxu0
        %451 = vrot.lane.b32.xlu0 %v402, 32
        %v452 = vpop.permute.xlu0 %451
        %453 = vrot.lane.b32.xlu0 %v404, 32
        %v454 = vpop.permute.xlu0 %453
        %v457 = vadd.f32 %v374, %v452
        %v458 = vadd.f32 %v376, %v454
        %461 = vrot.lane.b32.xlu0 %v445, 32
        %v462 = vpop.permute.xlu0 %461
        %463 = vrot.lane.b32.xlu0 %v447, 32
        %v464 = vpop.permute.xlu0 %463
        %v467 = vadd.f32 %v457, %v462
        %v468 = vadd.f32 %v458, %v464
        %vm469 = vcmp.gt.f32.partialorder %v467, 0.0
        %vm470 = vcmp.gt.f32.partialorder %v468, 0.0
        %v471 = vmul.f32 %v467, 0.01
        %v472 = vmul.f32 %v468, 0.01
        %v473 = vsel %vm469, %v467, %v471
        %v474 = vsel %vm470, %v468, %v472
        %477 = vrot.lane.b32.xlu0 %v473, 96
        %v478 = vpop.permute.xlu0 %477
        %479 = vrot.lane.b32.xlu0 %v474, 96
        %v480 = vpop.permute.xlu0 %479
        %483 = vxpose.xlu0.b32.start [1/16] %v478, 128
        %484 = vxpose.xlu0.b32.cont [2/16] %v480, 128
        %485 = vxpose.xlu0.b32.cont [3/16] 0.0, 128
        %486 = vxpose.xlu0.b32.cont [4/16] 0.0, 128
        %487 = vxpose.xlu0.b32.cont [5/16] 0.0, 128
        %488 = vxpose.xlu0.b32.cont [6/16] 0.0, 128
        %489 = vxpose.xlu0.b32.cont [7/16] 0.0, 128
        %490 = vxpose.xlu0.b32.cont [8/16] 0.0, 128
        %491 = vxpose.xlu0.b32.cont [9/16] 0.0, 128
        %492 = vxpose.xlu0.b32.cont [10/16] 0.0, 128
        %493 = vxpose.xlu0.b32.cont [11/16] 0.0, 128
        %494 = vxpose.xlu0.b32.cont [12/16] 0.0, 128
        %495 = vxpose.xlu0.b32.cont [13/16] 0.0, 128
        %496 = vxpose.xlu0.b32.cont [14/16] 0.0, 128
        %497 = vxpose.xlu0.b32.cont [15/16] 0.0, 128
        %498 = vxpose.xlu0.b32.end [16/16] 0.0, 128
        %v499 = vpop.trf.xlu0
        %v500 = vpop.trf.xlu0
        %v501 = vpop.trf.xlu0
        %v502 = vpop.trf.xlu0
        %v503 = vpop.trf.xlu0
        %v504 = vpop.trf.xlu0
        %v505 = vpop.trf.xlu0
        %v506 = vpop.trf.xlu0
        %v507 = vpop.trf.xlu0
        %v508 = vpop.trf.xlu0
        %v509 = vpop.trf.xlu0
        %v510 = vpop.trf.xlu0
        %v511 = vpop.trf.xlu0
        %v512 = vpop.trf.xlu0
        %v513 = vpop.trf.xlu0
        %v514 = vpop.trf.xlu0
        %v515 = vunpack.c.l.bf16 %v350
        %vm516 = vcmp.gt.f32.partialorder %v515, 0.0
        %v517 = vperm.slane %v499, 0
        %v518 = vsel %vm516, %v517, -1e+30
        %vm519 = vcmask 130048
        %v520 = vsel %vm519, %v518, -inf
        %521 = vmax.xlane.f32.xlu0 %v520
        %v522 = vpop.xlane.xlu0 %521
        %v523 = vpack.c.bf16 %v522, %v522
        %v525 = vsel %vm360, %v523, 0
        %527 = vmatpush.bf16.msra.mxu0 0
        %528 = vmatpush.bf16.msra.mxu0 0
        %529 = vmatpush.bf16.msra.mxu0 0
        %530 = vmatpush.bf16.msra.mxu0 0
        %531 = vmatpush.bf16.msra.mxu0 0
        %532 = vmatpush.bf16.msra.mxu0 0
        %533 = vmatpush.bf16.msra.mxu0 0
        %534 = vmatpush.bf16.msra.mxu0 %v525
        %535 = vmatmul.bf16.gmra.mxu0 %v387
        %v536 = vpop.f32.mrf.mxu0
        %v537 = vadd.f32 0.0, %v536
        %v538 = vpop.f32.mrf.mxu0
        %v539 = vadd.f32 0.0, %v538
        %540 = vdwg.mxu0
        %543 = vrot.lane.b32.xlu0 %v537, 32
        %v544 = vpop.permute.xlu0 %543
        %545 = vrot.lane.b32.xlu0 %v539, 32
        %v546 = vpop.permute.xlu0 %545
        %v549 = vsub.f32 %v473, %v544
        %v550 = vsub.f32 %v474, %v546
        %v551 = vmul.f32 %v549, 1.442695
        %v552 = vpow.pop %v551
        %v553 = vmul.f32 %v550, 1.442695
        %v554 = vpow.pop %v553
        %556 = vset.pattern.permute.xlu0 32
        %557 = vperm.xlu0 %556, %v552
        %v558 = vpop.permute.xlu0 %557
        %561 = vset.pattern.permute.xlu0 32
        %562 = vperm.xlu0 %561, %v554
        %v563 = vpop.permute.xlu0 %562
        %v565 = vmul.f32 %v558, %v374
        %v566 = vmul.f32 %v563, %v376
        %v567 = vpack.c.bf16 %v566, %v565
        %v569 = vsel %vm519, %v350, 0
        %571 = vmatpush.bf16.msra.mxu0 0
        %572 = vmatpush.bf16.msra.mxu0 0
        %573 = vmatpush.bf16.msra.mxu0 0
        %574 = vmatpush.bf16.msra.mxu0 0
        %575 = vmatpush.bf16.msra.mxu0 0
        %576 = vmatpush.bf16.msra.mxu0 0
        %577 = vmatpush.bf16.msra.mxu0 0
        %578 = vmatpush.bf16.msra.mxu0 %v567
        %579 = vmatmul.bf16.gmra.mxu0 %v569
        %v580 = vpop.f32.mrf.mxu0
        %v581 = vadd.f32 0.0, %v580
        %v582 = vpop.f32.mrf.mxu0
        %583 = vdwg.mxu0
        %v584 = vpack.c.bf16 %v554, %v552
        %586 = vrot.lane.b32.xlu0 %v584, 96
        %v587 = vpop.permute.xlu0 %586
        %589 = vmatpush.bf16.msra.mxu0 0
        %590 = vmatpush.bf16.msra.mxu0 0
        %591 = vmatpush.bf16.msra.mxu0 0
        %592 = vmatpush.bf16.msra.mxu0 0
        %593 = vmatpush.bf16.msra.mxu0 0
        %594 = vmatpush.bf16.msra.mxu0 0
        %595 = vmatpush.bf16.msra.mxu0 0
        %596 = vmatpush.bf16.msra.mxu0 %v587
        %597 = vmatmul.bf16.gmra.mxu0 %v569
        %v598 = vpop.f32.mrf.mxu0
        %v599 = vadd.f32 0.0, %v598
        %v600 = vpop.f32.mrf.mxu0
        %601 = vdwg.mxu0
        %vm602 = vcmp.gt.f32.partialorder %v599, 0.0
        %v603 = vsel %vm602, %v599, 1.0
        %v604 = vrcp.pop %v603
        %606 = vset.pattern.permute.xlu0 0
        %607 = vperm.xlu0 %606, %v604
        %v608 = vpop.permute.xlu0 %607
        %v610 = vmul.f32 %v581, %v608
        %v611 = vmul.f32 %v310, 0.5
        %v612 = vmul.f32 %v610, 0.5
        %v613 = vadd.f32 %v611, %v612
        %p614 = scmp.lt.s32.totalorder %s20, 1
        // Predicated region
        $region57: #{tpu_custom_call.1} parent=47 // pred_check
          %p615 = pneg %p614
        $region58: #{tpu_custom_call.1} parent=47 // pred_check_branch
          %617 = sbr.rel (%p615) target = $region60
        $region59: #{tpu_custom_call.1} parent=47 // pred_region
          %v618 = vmax.f32 %v613, 0.0
          %619 = vst.msk [vmem:[#allocation5] sm:$0xff] %vm328, %v618
        $region60: #{tpu_custom_call.1} parent=47 // pred_fallthru
          _
        %p620 = scmp.ge.s32.totalorder %s20, 1
        // Predicated region
        $region61: #{tpu_custom_call.1} parent=47 // pred_check
          %p621 = pneg %p620
        $region62: #{tpu_custom_call.1} parent=47 // pred_check_branch
          %623 = sbr.rel (%p621) target = $region64
        $region63: #{tpu_custom_call.1} parent=47 // pred_region
          %624 = vst.msk [vmem:[#allocation5] sm:$0xff] %vm328, %v613
        $region64: #{tpu_custom_call.1} parent=47 // pred_fallthru
          _
        // Predicated region
        $region65: #{tpu_custom_call.1} parent=47 // pred_check
          %p625 = pneg %p190
        $region66: #{tpu_custom_call.1} parent=47 // pred_check_branch
          %627 = sbr.rel (%p625) target = $region68
        $region67: #{tpu_custom_call.1} parent=47 // pred_region
          %629 = vsyncadd [#allocation4], 0
          %s631 = sshll.u32 [#allocation5], 4
          %s632 = int_to_ptr.vmem [resolvable:$true] %s631
          %s633 = sshll.u32 %s7, 4
          %s634 = int_to_ptr.hbm [resolvable:$true] %s633
          %636 = dma.vmem_to_hbm [thread:$0]  %s632, 128, %s634, [#allocation4]
        $region68: #{tpu_custom_call.1} parent=47 // pred_fallthru
          _
        // Predicated region
        $region69: #{tpu_custom_call.1} parent=47 // pred_check
          %p637 = pneg %p190
        $region70: #{tpu_custom_call.1} parent=47 // pred_check_branch
          %639 = sbr.rel (%p637) target = $region72
        $region71: #{tpu_custom_call.1} parent=47 // pred_region
          %641 = dma.done [#allocation4], 128
        $region72: #{tpu_custom_call.1} parent=47 // pred_fallthru
          _
      $region48: #{tpu_custom_call.1} parent=5 // pred_fallthru
        _
      %p642 = scmp.le.s32.totalorder 2, %s15
      // Predicated region
      $region73: #{tpu_custom_call.1} parent=5 // pred_check
        %p643 = pneg %p642
      $region74: #{tpu_custom_call.1} parent=5 // pred_check_branch
        %645 = sbr.rel (%p643) target = $region76
      $region75: #{tpu_custom_call.1} parent=5 // pred_region
        %s646 = ssub.s32 %s15, 2
      $region76: #{tpu_custom_call.1} parent=5 // pred_fallthru
        _
    $region6: #{tpu_custom_call.1} parent=1 // loop_footer
      %s19 = sadd.s32 1, %s15
    $region7: #{tpu_custom_call.1} parent=1 // loop_footer_branch
      %14 = sbr.rel target = $region3
    $region8: #{tpu_custom_call.1} parent=1 // loop_exit
      _
    %647 = vsyncpa [#allocation3], 1
    %s648 = scalar_lea.sflag [#allocation3], 1
    %649 = vsyncpa %s648, 1
    %650 = vsyncpa [#allocation4], 1
    %s651 = scalar_lea.sflag [#allocation4], 1
    %652 = vsyncpa %s651, 1

</llo_original>
